<compile_context>
chip_gen: v7x
topology: tpu7x:2x2x1
jax: 0.10.0
libtpu: 0.0.40
codegen_flags: <defaults>
</compile_context>

<pallas_src>
import math
import functools

import jax
import jax.numpy as jnp
from jax.experimental import pallas as pl
from jax.experimental.pallas import tpu as pltpu

_MIB = 1024 * 1024
_TM_CANDIDATES = (1024, 768, 512, 384, 256, 192, 128, 64, 32, 16, 8)


def _gelu_exact(x):
    # Exact (erf-based) GELU, matching torch.nn.GELU() default.
    return 0.5 * x * (1.0 + jax.lax.erf(x * (1.0 / math.sqrt(2.0))))


# --------------------------------------------------------------------------- #
# Kernels
# --------------------------------------------------------------------------- #
def _mlp_kernel_direct(x_ref, w1_ref, b1_ref, w2_ref, b2_ref, o_ref):
    """f32 output path: accumulate straight into the resident output block."""
    h_idx = pl.program_id(1)

    @pl.when(h_idx == 0)
    def _init():
        # Seed with the output bias so finalize needs no extra add.
        o_ref[...] = jnp.broadcast_to(b2_ref[...].astype(o_ref.dtype), o_ref.shape)

    x = x_ref[...]
    h = jnp.dot(x, w1_ref[...], preferred_element_type=jnp.float32) + b1_ref[...]
    h = _gelu_exact(h).astype(x_ref.dtype)
    o_ref[...] += jnp.dot(h, w2_ref[...], preferred_element_type=jnp.float32)


def _mlp_kernel_acc(x_ref, w1_ref, b1_ref, w2_ref, b2_ref, o_ref, acc_ref):
    """Generic path (e.g. bf16 output): f32 VMEM accumulator, cast at the end."""
    h_idx = pl.program_id(1)

    @pl.when(h_idx == 0)
    def _init():
        acc_ref[...] = jnp.broadcast_to(
            b2_ref[...].astype(jnp.float32), acc_ref.shape
        )

    x = x_ref[...]
    h = jnp.dot(x, w1_ref[...], preferred_element_type=jnp.float32) + b1_ref[...]
    h = _gelu_exact(h).astype(x_ref.dtype)
    acc_ref[...] += jnp.dot(h, w2_ref[...], preferred_element_type=jnp.float32)

    @pl.when(h_idx == pl.num_programs(1) - 1)
    def _finalize():
        o_ref[...] = acc_ref[...].astype(o_ref.dtype)


# --------------------------------------------------------------------------- #
# Tiling / VMEM budgeting
# --------------------------------------------------------------------------- #
@functools.lru_cache(maxsize=1)
def _vmem_capacity_and_budget():
    cap = 64 * _MIB  # conservative fallback == v7x per-TensorCore VMEM
    try:
        info = pltpu.get_tpu_info()
        c = int(getattr(info, "vmem_capacity_bytes", 0) or 0)
        if c > 0:
            cap = c
    except Exception:
        pass
    # Leave headroom for Mosaic internal scratch / semaphores.
    budget = max(cap - 12 * _MIB, 16 * _MIB)
    return cap, budget


def _round_up(x, m):
    return ((x + m - 1) // m) * m


def _footprint_bytes(tm, th, E, in_isize, out_isize, use_scratch):
    f = 2 * tm * E * in_isize              # x tile (double-buffered)
    f += 2 * tm * E * out_isize            # output tile (double-buffered)
    if use_scratch:
        f += tm * E * 4                    # f32 accumulator scratch
    f += 2 * E * th * in_isize             # W1 slice (double-buffered)
    f += 2 * th * E * in_isize             # W2 slice (double-buffered)
    f += 2 * th * in_isize + 2 * E * in_isize  # bias slices
    f += tm * th * 4                       # first-GEMM / GELU f32 slab
    f += tm * th * in_isize                # cast copy fed to the second GEMM
    return f


def _pick_hidden_tile(H, cap):
    # Largest divisor of H <= cap, preferring multiples of 128 (full MXU K).
    cap = max(1, min(cap, H))
    for th in range(cap, 0, -1):
        if H % th == 0 and (th % 128 == 0 or th == H):
            return th
    return H


def _choose_tiles(M, E, H, in_isize, out_isize, budget, tm_max, th_max, use_scratch):
    # Hidden tile: keep the full weights resident (th = H) when they fit the
    # budget comfortably -> hidden grid axis collapses, weights DMA'd once.
    if th_max is None:
        resident_w = 2 * 2 * E * H * in_isize  # W1 + W2, double-buffered
        th = H if resident_w <= 0.55 * budget else _pick_hidden_tile(H, 1024)
    else:
        th = _pick_hidden_tile(H, th_max)

    # Row tile: largest candidate whose total footprint fits the budget.
    if tm_max is None:
        cands = list(_TM_CANDIDATES)
    else:
        cap = max(8, (tm_max // 8) * 8)
        cands = [c for c in _TM_CANDIDATES if c <= cap]
        if not cands or cands[0] != cap:
            cands = [cap] + cands
    tm = cands[-1]
    for c in cands:
        if _footprint_bytes(c, th, E, in_isize, out_isize, use_scratch) <= budget:
            tm = c
            break

    # Clamp to the problem, and ensure >= 2 row tiles so both TensorCores get
    # work on the "parallel" row axis (v7x); no-op for large M.
    tm = min(tm, _round_up(M, 8))
    if M > 8:
        tm = min(tm, _round_up(-(-M // 2), 8))
    tm = max(tm, 8)
    return tm, th


# --------------------------------------------------------------------------- #
# pallas_call wrapper
# --------------------------------------------------------------------------- #
@functools.partial(
    jax.jit, static_argnames=("tm", "th", "use_scratch", "vmem_limit")
)
def _mlp_pallas(x2, w1, b1_2, w2, b2_2, *, tm, th, use_scratch, vmem_limit):
    M, E = x2.shape
    H = w1.shape[1]
    grid = (pl.cdiv(M, tm), H // th)

    kernel = _mlp_kernel_acc if use_scratch else _mlp_kernel_direct
    scratch = [pltpu.VMEM((tm, E), jnp.float32)] if use_scratch else []

    return pl.pallas_call(
        kernel,
        out_shape=jax.ShapeDtypeStruct((M, E), x2.dtype),
        grid_spec=pltpu.PrefetchScalarGridSpec(
            num_scalar_prefetch=0,
            grid=grid,
            in_specs=[
                pl.BlockSpec((tm, E), lambda i, h: (i, 0)),   # x rows (resident over h)
                pl.BlockSpec((E, th), lambda i, h: (0, h)),   # W1 hidden slice
                pl.BlockSpec((1, th), lambda i, h: (0, h)),   # b1 hidden slice
                pl.BlockSpec((th, E), lambda i, h: (h, 0)),   # W2 hidden slice
                pl.BlockSpec((1, E), lambda i, h: (0, 0)),    # b2 (constant)
            ],
            out_specs=pl.BlockSpec((tm, E), lambda i, h: (i, 0)),
            scratch_shapes=scratch,
        ),
        compiler_params=pltpu.CompilerParams(
            dimension_semantics=("parallel", "arbitrary"),
            vmem_limit_bytes=vmem_limit,
        ),
    )(x2, w1, b1_2, w2, b2_2)


def mlp_forward(x, w1, b1, w2, b2, *, tm_max=None, th_max=None):
    """x: (B, T, E). w1: (E, 4E), b1: (4E,), w2: (4E, E), b2: (E,).

    Weights are stored (in, out), i.e. transposed vs torch.nn.Linear.weight,
    so the kernel computes y = gelu(x @ W1 + b1) @ W2 + b2 directly.
    For production GPT configs pass x / W1 / W2 in bfloat16 (the kernel keeps
    f32 accumulation for both GEMMs).
    """
    B, T, E = x.shape
    H = w1.shape[1]
    M = B * T

    in_isize = jnp.dtype(x.dtype).itemsize
    out_isize = in_isize
    use_scratch = x.dtype != jnp.float32  # f32 output accumulates into o_ref

    cap, budget = _vmem_capacity_and_budget()
    tm, th = _choose_tiles(
        M, E, H, in_isize, out_isize, budget, tm_max, th_max, use_scratch
    )

    footprint = _footprint_bytes(tm, th, E, in_isize, out_isize, use_scratch)
    vmem_limit = int(
        min(max(int(1.3 * footprint) + 4 * _MIB, 32 * _MIB), cap - 8 * _MIB)
    )

    out = _mlp_pallas(
        x.reshape(M, E), w1, b1.reshape(1, H), w2, b2.reshape(1, E),
        tm=tm, th=th, use_scratch=use_scratch, vmem_limit=vmem_limit,
    )
    return out.reshape(B, T, E)


# --------------------------------------------------------------------------- #
# Reference & test harness
# --------------------------------------------------------------------------- #
def reference_mlp(x, w1, b1, w2, b2):
    xf = x.astype(jnp.float32)
    h = jnp.einsum("bte,eh->bth", xf, w1.astype(jnp.float32)) + b1.astype(jnp.float32)
    h = 0.5 * h * (1.0 + jax.lax.erf(h / jnp.sqrt(2.0)))
    h = h.astype(x.dtype).astype(jnp.float32)  # match the kernel's pre-GEMM-2 cast
    y = jnp.einsum("bth,he->bte", h, w2.astype(jnp.float32)) + b2.astype(jnp.float32)
    return y.astype(x.dtype)


def _make_params(key, E, H, dtype=jnp.float32):
    kw1, kb1, kw2, kb2 = jax.random.split(key, 4)
    bound1 = 1.0 / math.sqrt(E)
    bound2 = 1.0 / math.sqrt(H)
    # Stored (in, out) so the kernel does x @ W directly (torch stores (out, in)).
    w1 = jax.random.uniform(kw1, (E, H), minval=-bound1, maxval=bound1).astype(dtype)
    b1 = jax.random.uniform(kb1, (H,), minval=-bound1, maxval=bound1).astype(dtype)
    w2 = jax.random.uniform(kw2, (H, E), minval=-bound2, maxval=bound2).astype(dtype)
    b2 = jax.random.uniform(kb2, (E,), minval=-bound2, maxval=bound2).astype(dtype)
    return w1, b1, w2, b2


if __name__ == "__main__":
    key = jax.random.PRNGKey(0)

    # --- Check 1: module-consistent small shape (batch=2, seq=8, n_embd=32),
    # f32, auto tiles (weights resident, hidden axis collapses). ---
    B, T, E = 2, 8, 32
    H = 4 * E
    kx, kp = jax.random.split(key)
    x = jax.random.normal(kx, (B, T, E), dtype=jnp.float32)
    w1, b1, w2, b2 = _make_params(kp, E, H)

    out = jax.block_until_ready(mlp_forward(x, w1, b1, w2, b2))
    ref = reference_mlp(x, w1, b1, w2, b2)
    assert out.shape == (B, T, E)
    assert jnp.allclose(out, ref, atol=1e-5, rtol=1e-5), "mismatch vs reference (cfg 1)"

    # --- Check 2: multiple row tiles AND multiple hidden (reduction) tiles,
    # f32 direct-accumulation-into-output path. ---
    B2, T2, E2 = 2, 24, 128
    H2 = 4 * E2
    kx2, kp2 = jax.random.split(jax.random.PRNGKey(1))
    x2 = jax.random.normal(kx2, (B2, T2, E2), dtype=jnp.float32)
    w1b, b1b, w2b, b2b = _make_params(kp2, E2, H2)

    out2 = jax.block_until_ready(
        mlp_forward(x2, w1b, b1b, w2b, b2b, tm_max=16, th_max=256)
    )
    ref2 = reference_mlp(x2, w1b, b1b, w2b, b2b)
    assert out2.shape == (B2, T2, E2)
    assert jnp.allclose(out2, ref2, atol=1e-4, rtol=1e-4), "mismatch vs reference (cfg 2)"

    # --- Check 3: bf16 (production dtype) exercising the f32-scratch
    # accumulator path with multiple row and hidden tiles. ---
    B3, T3, E3 = 2, 32, 128
    H3 = 4 * E3
    kx3, kp3 = jax.random.split(jax.random.PRNGKey(2))
    x3 = jax.random.normal(kx3, (B3, T3, E3)).astype(jnp.bfloat16)
    w1c, b1c, w2c, b2c = _make_params(kp3, E3, H3, dtype=jnp.bfloat16)

    out3 = jax.block_until_ready(
        mlp_forward(x3, w1c, b1c, w2c, b2c, tm_max=32, th_max=256)
    )
    ref3 = reference_mlp(x3, w1c, b1c, w2c, b2c)
    assert out3.shape == (B3, T3, E3)
    assert jnp.allclose(
        out3.astype(jnp.float32), ref3.astype(jnp.float32), atol=3e-2, rtol=3e-2
    ), "mismatch vs reference (cfg 3, bf16)"

    print("KERNEL_OK")
</pallas_src>

<mosaic_0001>
module attributes {stable_mosaic.version = 11 : i64} {
  func.func @_mlp_kernel_direct(%arg0: i32, %arg1: i32, %arg2: memref<8x32xf32, #tpu.memory_space<vmem>>, %arg3: memref<32x128xf32, #tpu.memory_space<vmem>>, %arg4: memref<1x128xf32, #tpu.memory_space<vmem>>, %arg5: memref<128x32xf32, #tpu.memory_space<vmem>>, %arg6: memref<1x32xf32, #tpu.memory_space<vmem>>, %arg7: memref<8x32xf32, #tpu.memory_space<vmem>>) attributes {dimension_semantics = [#tpu.dimension_semantics<parallel>, #tpu.dimension_semantics<arbitrary>], iteration_bounds = array<i64: 2, 1>, scalar_prefetch = 0 : i64, scratch_operands = 0 : i64, tpu.core_type = #tpu.core_type<tc>, window_params = [{transform_indices = @transform_0, window_bounds = array<i64: 8, 32>}, {transform_indices = @transform_1, window_bounds = array<i64: 32, 128>}, {transform_indices = @transform_2, window_bounds = array<i64: 1, 128>}, {transform_indices = @transform_3, window_bounds = array<i64: 128, 32>}, {pipeline_mode = #tpu.pipeline_mode<synchronous>, transform_indices = @transform_4, window_bounds = array<i64: 1, 32>}, {transform_indices = @transform_5, window_bounds = array<i64: 8, 32>}]} {
    %c0_i32 = arith.constant 0 : i32
    %0 = arith.cmpi eq, %arg1, %c0_i32 : i32
    %1 = arith.extui %0 : i1 to i32
    %c0_i32_0 = arith.constant 0 : i32
    %2 = arith.cmpi ne, %1, %c0_i32_0 : i32
    scf.if %2 {
      %c0_16 = arith.constant 0 : index
      %c0_17 = arith.constant 0 : index
      %22 = vector.load %arg6[%c0_16, %c0_17] : memref<1x32xf32, #tpu.memory_space<vmem>>, vector<1x32xf32>
      %23 = vector.shape_cast %22 : vector<1x32xf32> to vector<1x32xf32>
      %24 = vector.broadcast %23 : vector<1x32xf32> to vector<8x32xf32>
      %c0_18 = arith.constant 0 : index
      %c0_19 = arith.constant 0 : index
      %25 = vector.load %arg7[%c0_18, %c0_19] : memref<8x32xf32, #tpu.memory_space<vmem>>, vector<8x32xf32>
      tpu.vector_store %arg7[%c0_18, %c0_19], %24 {strides = array<i32>} : memref<8x32xf32, #tpu.memory_space<vmem>>, vector<8x32xf32>,
    } else {
    }
    %c0 = arith.constant 0 : index
    %c0_1 = arith.constant 0 : index
    %3 = vector.load %arg2[%c0, %c0_1] : memref<8x32xf32, #tpu.memory_space<vmem>>, vector<8x32xf32>
    %c0_2 = arith.constant 0 : index
    %c0_3 = arith.constant 0 : index
    %4 = vector.load %arg3[%c0_2, %c0_3] : memref<32x128xf32, #tpu.memory_space<vmem>>, vector<32x128xf32>
    %cst = arith.constant dense<0.000000e+00> : vector<8x128xf32>
    %5 = tpu.matmul %3, %4, %cst {dimension_numbers = #tpu.dot_dimension_numbers<[1], [0], [0], [1], [0, 0, 1, 1], [], []>} : vector<8x32xf32>, vector<32x128xf32>, vector<8x128xf32> -> vector<8x128xf32>
    %c0_4 = arith.constant 0 : index
    %c0_5 = arith.constant 0 : index
    %6 = vector.load %arg4[%c0_4, %c0_5] : memref<1x128xf32, #tpu.memory_space<vmem>>, vector<1x128xf32>
    %7 = vector.broadcast %6 : vector<1x128xf32> to vector<8x128xf32>
    %8 = arith.addf %5, %7 : vector<8x128xf32>
    %cst_6 = arith.constant 5.000000e-01 : f32
    %9 = vector.broadcast %cst_6 : f32 to vector<8x128xf32>
    %10 = arith.mulf %9, %8 : vector<8x128xf32>
    %cst_7 = arith.constant 0.707106769 : f32
    %11 = vector.broadcast %cst_7 : f32 to vector<8x128xf32>
    %12 = arith.mulf %8, %11 : vector<8x128xf32>
    %13 = math.erf %12 : vector<8x128xf32>
    %cst_8 = arith.constant 1.000000e+00 : f32
    %14 = vector.broadcast %cst_8 : f32 to vector<8x128xf32>
    %15 = arith.addf %14, %13 : vector<8x128xf32>
    %16 = arith.mulf %10, %15 : vector<8x128xf32>
    %c0_9 = arith.constant 0 : index
    %c0_10 = arith.constant 0 : index
    %17 = vector.load %arg7[%c0_9, %c0_10] : memref<8x32xf32, #tpu.memory_space<vmem>>, vector<8x32xf32>
    %c0_11 = arith.constant 0 : index
    %c0_12 = arith.constant 0 : index
    %18 = vector.load %arg5[%c0_11, %c0_12] : memref<128x32xf32, #tpu.memory_space<vmem>>, vector<128x32xf32>
    %cst_13 = arith.constant dense<0.000000e+00> : vector<8x32xf32>
    %19 = tpu.matmul %16, %18, %cst_13 {dimension_numbers = #tpu.dot_dimension_numbers<[1], [0], [0], [1], [0, 0, 1, 1], [], []>} : vector<8x128xf32>, vector<128x32xf32>, vector<8x32xf32> -> vector<8x32xf32>
    %20 = arith.addf %17, %19 : vector<8x32xf32>
    %c0_14 = arith.constant 0 : index
    %c0_15 = arith.constant 0 : index
    %21 = vector.load %arg7[%c0_14, %c0_15] : memref<8x32xf32, #tpu.memory_space<vmem>>, vector<8x32xf32>
    tpu.vector_store %arg7[%c0_14, %c0_15], %20 {strides = array<i32>} : memref<8x32xf32, #tpu.memory_space<vmem>>, vector<8x32xf32>,
    return
  }
  func.func @transform_0(%arg0: i32, %arg1: i32) -> (i32, i32) {
    %c0_i32 = arith.constant 0 : i32
    %c0_i32_0 = arith.constant 0 : i32
    return %arg0, %c0_i32 : i32, i32
  }
  func.func @transform_1(%arg0: i32, %arg1: i32) -> (i32, i32) {
    %c0_i32 = arith.constant 0 : i32
    %c0_i32_0 = arith.constant 0 : i32
    return %c0_i32, %arg1 : i32, i32
  }
  func.func @transform_2(%arg0: i32, %arg1: i32) -> (i32, i32) {
    %c0_i32 = arith.constant 0 : i32
    %c0_i32_0 = arith.constant 0 : i32
    return %c0_i32, %arg1 : i32, i32
  }
  func.func @transform_3(%arg0: i32, %arg1: i32) -> (i32, i32) {
    %c0_i32 = arith.constant 0 : i32
    %c0_i32_0 = arith.constant 0 : i32
    return %arg1, %c0_i32 : i32, i32
  }
  func.func @transform_4(%arg0: i32, %arg1: i32) -> (i32, i32) {
    %c0_i32 = arith.constant 0 : i32
    %c0_i32_0 = arith.constant 0 : i32
    %c0_i32_1 = arith.constant 0 : i32
    return %c0_i32, %c0_i32_0 : i32, i32
  }
  func.func @transform_5(%arg0: i32, %arg1: i32) -> (i32, i32) {
    %c0_i32 = arith.constant 0 : i32
    %c0_i32_0 = arith.constant 0 : i32
    return %arg0, %c0_i32 : i32, i32
  }
}

</mosaic_0001>

<llo_original>
// kernel: _mlp_pallas.1
$region0: #{_mlp_pallas.1}
  #allocation0 [shape = 'u32[]', space=smem, size = 0x4, offset = 0x4, fixed_abs, tag = 'smem constant byte address 0x4 - core index']
  #allocation1 [shape = 'u32[144,128]{1,0:T(1,128)}', space=vmem, size = 0x12000, scoped, tag = 'internal scratch']
  %s0 = inlined_call_operand.vmem [shape: f32[16,32], index: 0, kind: input, shape index: {}]
  %s1 = inlined_call_operand.vmem [shape: f32[32,128], index: 1, kind: input, shape index: {}]
  %s2 = inlined_call_operand.vmem [shape: f32[1,128], index: 2, kind: input, shape index: {}]
  %s3 = inlined_call_operand.vmem [shape: f32[128,32], index: 3, kind: input, shape index: {}]
  %s4 = inlined_call_operand.vmem [shape: f32[1,32], index: 4, kind: input, shape index: {}]
  %s5 = inlined_call_operand.hbm [shape: f32[16,32], index: 5, kind: output, shape index: {}]
  %s6 = sld [smem:[#allocation0]]
  $region57: #{_mlp_pallas.1} parent=0
    _
  %s8 = ssub.s32 1, %s6
  %s9 = scalar_select 0, %s8, %s6
  $region1: #{_mlp_pallas.1} parent=0
    #allocation2 [shape = 'u8[8192]{0}', space=vmem, size = 0x2000, scoped, tag = 'output window, operand 0']
    #allocation3 [shape = 's32[2]{0}', space=sflag, size = 0x8, scoped, tag = 'scoped memory for _mlp_pallas.1']
    %10 = vsyncpa [#allocation3], 0
    %s11 = scalar_lea.sflag [#allocation3], 1
    %12 = vsyncpa %s11, 0
    loop: start=0, step=1, limit=4
    $region2: #{_mlp_pallas.1} parent=1 // loop_pre_header
      _
    $region3: #{_mlp_pallas.1} parent=1 // loop_header
      %s14 = sphi 0, %s18
      %p15 = scmp.ge.s32.totalorder %s14, 4
      %s21 = sphi 0, %s33
      %s22 = sphi 0, %s29
      %s23 = sphi 0, %s21
      %s24 = sphi 0, %s22
      %s25 = sphi 0, %s23
      %s26 = sphi 0, %s24
      %s36 = sphi 0, %s38
      %s39 = sphi 0, %s36
      %s40 = sphi 0, %s39
      %s56 = sphi 0, %s40
      %s62 = sphi 0, %s64
      %s65 = sphi 0, %s62
      %s66 = sphi 0, %s65
      %s82 = sphi 0, %s66
      %s88 = sphi 0, %s90
      %s91 = sphi 0, %s88
      %s92 = sphi 0, %s91
      %s108 = sphi 0, %s92
      %s114 = sphi 0, %s116
      %s117 = sphi 0, %s114
      %s118 = sphi 0, %s117
      %s134 = sphi 0, %s118
      %s138 = sphi 0, %s138
      %s140 = sphi 0, %s138
      %s141 = sphi 0, %s140
      %s155 = sphi 0, %s141
      %s161 = sphi 0, %s163
      %s164 = sphi 0, %s161
      %s165 = sphi 0, %s164
      %s181 = sphi 0, %s165
    $region4: #{_mlp_pallas.1} parent=1 // loop_header_branch
      %17 = sbr.rel (%p15) target = $region8
    $region5: #{_mlp_pallas.1} parent=1 // loop_body
      %s19 = ssub.s32 %s14, 1
      %s20 = ssub.s32 %s14, 2
      %s27 = sadd.s32 1, %s22
      %p28 = scmp.ge.s32.totalorder %s27, 1
      %s29 = scalar_select %p28, 0, %s27
      %s30 = sadd.s32 1, %s21
      %s31 = scalar_select %p28, %s30, %s21
      %p32 = scmp.ge.s32.totalorder %s31, 2
      %s33 = scalar_select %p32, 0, %s31
      %s34 = ssub.s32 %s21, %s33
      %p35 = scmp.eq.s32.totalorder %s34, 0
      %s37 = sadd.s32 %s36, 1
      %s38 = scalar_select %p35, %s36, %s37
      %p41 = pneg %p35
      %p42 = scmp.eq.s32.totalorder %s14, 1
      %p43 = por %p41, %p42
      %p44 = scmp.ne.s32.totalorder %s36, %s39
      %p45 = scmp.eq.s32.totalorder %s14, 0
      %p46 = por %p44, %p45
      %p47 = scmp.ne.s32.totalorder %s36, %s39
      %p48 = scmp.eq.s32.totalorder %s19, 1
      %p49 = por %p47, %p48
      %p50 = scmp.ne.s32.totalorder %s39, %s40
      %p51 = scmp.eq.s32.totalorder %s19, 0
      %p52 = por %p50, %p51
      %p53 = scmp.ne.s32.totalorder %s39, %s40
      %p54 = scmp.eq.s32.totalorder %s20, 1
      %p55 = por %p53, %p54
      %p57 = scmp.ne.s32.totalorder %s40, %s56
      %p58 = scmp.eq.s32.totalorder %s20, 0
      %p59 = por %p57, %p58
      %s60 = ssub.s32 %s22, %s29
      %p61 = scmp.eq.s32.totalorder %s60, 0
      %s63 = sadd.s32 %s62, 1
      %s64 = scalar_select %p61, %s62, %s63
      %p67 = pneg %p61
      %p68 = scmp.eq.s32.totalorder %s14, 1
      %p69 = por %p67, %p68
      %p70 = scmp.ne.s32.totalorder %s62, %s65
      %p71 = scmp.eq.s32.totalorder %s14, 0
      %p72 = por %p70, %p71
      %p73 = scmp.ne.s32.totalorder %s62, %s65
      %p74 = scmp.eq.s32.totalorder %s19, 1
      %p75 = por %p73, %p74
      %p76 = scmp.ne.s32.totalorder %s65, %s66
      %p77 = scmp.eq.s32.totalorder %s19, 0
      %p78 = por %p76, %p77
      %p79 = scmp.ne.s32.totalorder %s65, %s66
      %p80 = scmp.eq.s32.totalorder %s20, 1
      %p81 = por %p79, %p80
      %p83 = scmp.ne.s32.totalorder %s66, %s82
      %p84 = scmp.eq.s32.totalorder %s20, 0
      %p85 = por %p83, %p84
      %s86 = ssub.s32 %s22, %s29
      %p87 = scmp.eq.s32.totalorder %s86, 0
      %s89 = sadd.s32 %s88, 1
      %s90 = scalar_select %p87, %s88, %s89
      %p93 = pneg %p87
      %p94 = scmp.eq.s32.totalorder %s14, 1
      %p95 = por %p93, %p94
      %p96 = scmp.ne.s32.totalorder %s88, %s91
      %p97 = scmp.eq.s32.totalorder %s14, 0
      %p98 = por %p96, %p97
      %p99 = scmp.ne.s32.totalorder %s88, %s91
      %p100 = scmp.eq.s32.totalorder %s19, 1
      %p101 = por %p99, %p100
      %p102 = scmp.ne.s32.totalorder %s91, %s92
      %p103 = scmp.eq.s32.totalorder %s19, 0
      %p104 = por %p102, %p103
      %p105 = scmp.ne.s32.totalorder %s91, %s92
      %p106 = scmp.eq.s32.totalorder %s20, 1
      %p107 = por %p105, %p106
      %p109 = scmp.ne.s32.totalorder %s92, %s108
      %p110 = scmp.eq.s32.totalorder %s20, 0
      %p111 = por %p109, %p110
      %s112 = ssub.s32 %s22, %s29
      %p113 = scmp.eq.s32.totalorder %s112, 0
      %s115 = sadd.s32 %s114, 1
      %s116 = scalar_select %p113, %s114, %s115
      %p119 = pneg %p113
      %p120 = scmp.eq.s32.totalorder %s14, 1
      %p121 = por %p119, %p120
      %p122 = scmp.ne.s32.totalorder %s114, %s117
      %p123 = scmp.eq.s32.totalorder %s14, 0
      %p124 = por %p122, %p123
      %p125 = scmp.ne.s32.totalorder %s114, %s117
      %p126 = scmp.eq.s32.totalorder %s19, 1
      %p127 = por %p125, %p126
      %p128 = scmp.ne.s32.totalorder %s117, %s118
      %p129 = scmp.eq.s32.totalorder %s19, 0
      %p130 = por %p128, %p129
      %p131 = scmp.ne.s32.totalorder %s117, %s118
      %p132 = scmp.eq.s32.totalorder %s20, 1
      %p133 = por %p131, %p132
      %p135 = scmp.ne.s32.totalorder %s118, %s134
      %p136 = scmp.eq.s32.totalorder %s20, 0
      %p137 = por %p135, %p136
      %s139 = sadd.s32 %s138, 1
      %p142 = scmp.eq.s32.totalorder %s14, 1
      %p143 = scmp.ne.s32.totalorder %s138, %s140
      %p144 = scmp.eq.s32.totalorder %s14, 0
      %p145 = por %p143, %p144
      %p146 = scmp.ne.s32.totalorder %s138, %s140
      %p147 = scmp.eq.s32.totalorder %s19, 1
      %p148 = por %p146, %p147
      %p149 = scmp.ne.s32.totalorder %s140, %s141
      %p150 = scmp.eq.s32.totalorder %s19, 0
      %p151 = por %p149, %p150
      %p152 = scmp.ne.s32.totalorder %s140, %s141
      %p153 = scmp.eq.s32.totalorder %s20, 1
      %p154 = por %p152, %p153
      %p156 = scmp.ne.s32.totalorder %s141, %s155
      %p157 = scmp.eq.s32.totalorder %s20, 0
      %p158 = por %p156, %p157
      %s159 = ssub.s32 %s21, %s33
      %p160 = scmp.eq.s32.totalorder %s159, 0
      %s162 = sadd.s32 %s161, 1
      %s163 = scalar_select %p160, %s161, %s162
      %p166 = pneg %p160
      %p167 = scmp.eq.s32.totalorder %s14, 1
      %p168 = por %p166, %p167
      %p169 = scmp.ne.s32.totalorder %s161, %s164
      %p170 = scmp.eq.s32.totalorder %s14, 0
      %p171 = por %p169, %p170
      %p172 = scmp.ne.s32.totalorder %s161, %s164
      %p173 = scmp.eq.s32.totalorder %s19, 1
      %p174 = por %p172, %p173
      %p175 = scmp.ne.s32.totalorder %s164, %s165
      %p176 = scmp.eq.s32.totalorder %s19, 0
      %p177 = por %p175, %p176
      %p178 = scmp.ne.s32.totalorder %s164, %s165
      %p179 = scmp.eq.s32.totalorder %s20, 1
      %p180 = por %p178, %p179
      %p182 = scmp.ne.s32.totalorder %s165, %s181
      %p183 = scmp.eq.s32.totalorder %s20, 0
      %p184 = por %p182, %p183
      %p185 = scmp.le.s32.totalorder 1, %s14
      %p186 = scmp.lt.s32.totalorder %s14, 3
      %p187 = pnand %p185, %p186
      %p188 = pneg %p187
      // Predicated region
      $region9: #{_mlp_pallas.1} parent=5 // pred_check
        _
      $region10: #{_mlp_pallas.1} parent=5 // pred_check_branch
        %190 = sbr.rel (%p187) target = $region12
      $region11: #{_mlp_pallas.1} parent=5 // pred_region
        %s191 = ssub.s32 %s14, 1
        // Predicated region
        $region13: #{_mlp_pallas.1} parent=11 // pred_check
          %p192 = pneg %p78
        $region14: #{_mlp_pallas.1} parent=11 // pred_check_branch
          %194 = sbr.rel (%p192) target = $region16
        $region15: #{_mlp_pallas.1} parent=11 // pred_region
          %p195 = scmp.lt.s32.totalorder %s24, 0
          %s196 = scalar_select %p195, %s24, 0
          %s197 = smul.addr %s196, 8
          %s198 = scalar_lea.vmem %s1, %s197
        $region16: #{_mlp_pallas.1} parent=11 // pred_fallthru
          _
        // Predicated region
        $region17: #{_mlp_pallas.1} parent=11 // pred_check
          %p199 = pneg %p104
        $region18: #{_mlp_pallas.1} parent=11 // pred_check_branch
          %201 = sbr.rel (%p199) target = $region20
        $region19: #{_mlp_pallas.1} parent=11 // pred_region
          %p202 = scmp.lt.s32.totalorder %s24, 0
          %s203 = scalar_select %p202, %s24, 0
          %s204 = scalar_lea.vmem %s2, %s203
        $region20: #{_mlp_pallas.1} parent=11 // pred_fallthru
          _
        // Predicated region
        $region21: #{_mlp_pallas.1} parent=11 // pred_check
          %p205 = pneg %p130
        $region22: #{_mlp_pallas.1} parent=11 // pred_check_branch
          %207 = sbr.rel (%p205) target = $region24
        $region23: #{_mlp_pallas.1} parent=11 // pred_region
          %s208 = smul.u32 16, %s24
          %p209 = scmp.lt.s32.totalorder %s208, 15
          %s210 = scalar_select %p209, %s208, 15
          %s211 = smul.addr %s210, 8
          %s212 = scalar_lea.vmem %s3, %s211
          %s213 = smul.u32 16, %s24
        $region24: #{_mlp_pallas.1} parent=11 // pred_fallthru
          _
        // Predicated region
        $region25: #{_mlp_pallas.1} parent=11 // pred_check
          %p214 = pneg %p151
        $region26: #{_mlp_pallas.1} parent=11 // pred_check_branch
          %216 = sbr.rel (%p214) target = $region28
        $region27: #{_mlp_pallas.1} parent=11 // pred_region
          _
        $region28: #{_mlp_pallas.1} parent=11 // pred_fallthru
          _
      $region12: #{_mlp_pallas.1} parent=5 // pred_fallthru
        _
      %p217 = scmp.lt.s32.totalorder %s14, 2
      // Predicated region
      $region29: #{_mlp_pallas.1} parent=5 // pred_check
        %p218 = pneg %p217
      $region30: #{_mlp_pallas.1} parent=5 // pred_check_branch
        %220 = sbr.rel (%p218) target = $region32
      $region31: #{_mlp_pallas.1} parent=5 // pred_region
        // Predicated region
        $region33: #{_mlp_pallas.1} parent=31 // pred_check
          %p221 = pneg %p46
        $region34: #{_mlp_pallas.1} parent=31 // pred_check_branch
          %223 = sbr.rel (%p221) target = $region36
        $region35: #{_mlp_pallas.1} parent=31 // pred_region
          %p224 = scmp.lt.s32.totalorder %s21, 1
          %s225 = scalar_select %p224, %s21, 1
          %s226 = smul.addr %s225, 8
          %s227 = scalar_lea.vmem %s0, %s226
        $region36: #{_mlp_pallas.1} parent=31 // pred_fallthru
          _
      $region32: #{_mlp_pallas.1} parent=5 // pred_fallthru
        _
      %p228 = scmp.le.s32.totalorder 1, %s14
      %p229 = scmp.lt.s32.totalorder %s14, 3
      %p230 = pnand %p228, %p229
      %p231 = pneg %p230
      // Predicated region
      $region37: #{_mlp_pallas.1} parent=5 // pred_check
        _
      $region38: #{_mlp_pallas.1} parent=5 // pred_check_branch
        %233 = sbr.rel (%p230) target = $region40
      $region39: #{_mlp_pallas.1} parent=5 // pred_region
        %s234 = ssub.s32 %s14, 1
        %p235 = scmp.lt.s32.totalorder %s23, 1
        %s236 = scalar_select %p235, %s23, 1
        %s237 = smul.addr %s236, 8
        %s238 = scalar_lea.vmem %s0, %s237
        %p239 = pneg %p52
        %p240 = pneg %p49
        %p241 = scmp.lt.s32.totalorder %s24, 0
        %s242 = scalar_select %p241, %s24, 0
        %s243 = smul.addr %s242, 8
        %s244 = scalar_lea.vmem %s1, %s243
        %p245 = pneg %p78
        %p246 = pneg %p75
        %p247 = scmp.lt.s32.totalorder %s24, 0
        %s248 = scalar_select %p247, %s24, 0
        %s249 = scalar_lea.vmem %s2, %s248
        %p250 = pneg %p104
        %p251 = pneg %p101
        %s252 = smul.u32 16, %s24
        %p253 = scmp.lt.s32.totalorder %s252, 15
        %s254 = scalar_select %p253, %s252, 15
        %s255 = smul.addr %s254, 8
        %s256 = scalar_lea.vmem %s3, %s255
        %p257 = pneg %p130
        %p258 = pneg %p127
        %p259 = pneg %p151
        %p260 = pneg %p148
        %p261 = pneg %p177
        %p262 = pneg %p174
        %s263 = sand.u32 %s164, 1
        %s264 = scalar_lea.sflag [#allocation3], %s263
        %s265 = sand.u32 %s164, 1
        %s266 = smul.addr %s265, 8
        %s267 = scalar_lea.vmem [#allocation2], %s266
        %p268 = scmp.lt.s32.totalorder %s23, 1
        %s269 = scalar_select %p268, %s23, 1
        %s270 = smul.addr %s269, 8
        %s271 = scalar_lea.vmem %s0, %s270
        %p272 = scmp.lt.s32.totalorder %s24, 0
        %s273 = scalar_select %p272, %s24, 0
        %s274 = smul.addr %s273, 8
        %s275 = scalar_lea.vmem %s1, %s274
        %p276 = scmp.lt.s32.totalorder %s24, 0
        %s277 = scalar_select %p276, %s24, 0
        %s278 = scalar_lea.vmem %s2, %s277
        %s279 = smul.u32 16, %s24
        %p280 = scmp.lt.s32.totalorder %s279, 15
        %s281 = scalar_select %p280, %s279, 15
        %s282 = smul.addr %s281, 8
        %s283 = scalar_lea.vmem %s3, %s282
        %s284 = smul.u32 16, %s24
        %p285 = scmp.eq.s32.totalorder %s24, 0
        // Predicated region
        $region41: #{_mlp_pallas.1} parent=39 // pred_check
          %p286 = pneg %p285
        $region42: #{_mlp_pallas.1} parent=39 // pred_check_branch
          %288 = sbr.rel (%p286) target = $region44
        $region43: #{_mlp_pallas.1} parent=39 // pred_region
          %v289 = vld [vmem:[%s4] sm:$0x1]
          %v291 = vlaneseq
          %v292 = vshrl.u32 %v291, 7
          %v293 = vsub.s32 0, %v292
          %v294 = vrot.slane %v289, %v293
          %vm296 = vcmask 261120
          %297 = vst.msk [vmem:[%s267] sm:$0xff] %vm296, %v294
        $region44: #{_mlp_pallas.1} parent=39 // pred_fallthru
          _
        %v298 = vld [vmem:[%s271] sm:$0xff]
        %v299 = vld [vmem:[%s275] sm:$0xff]
        %v300 = vld [vmem:[%s275 + $0x8] sm:$0xff]
        %v301 = vld [vmem:[%s275 + $0x10] sm:$0xff]
        %v302 = vld [vmem:[%s275 + $0x18] sm:$0xff]
        %v303 = vld [vmem:[%s278] sm:$0x1]
        %v305 = vlaneseq
        %v306 = vshrl.u32 %v305, 7
        %v307 = vsub.s32 0, %v306
        %v308 = vrot.slane %v303, %v307
        %vm310 = vcmask 261120
        %v312 = vsel %vm310, %v298, 0
        %314 = vmatprep.subr.mxu0 0.0
        %315 = vmatpush1.msra.mxu0 %v299
        %316 = vmatprep.subr.mxu0 0.0
        %317 = vmatpush1.msra.mxu0 %v300
        %318 = vmatprep.subr.mxu0 0.0
        %319 = vmatpush1.msra.mxu0 %v301
        %320 = vmatprep.subr.mxu0 0.0
        %321 = vmatpush1.msra.mxu0 %v302
        %322 = vmatprep.subr.mxu0 0.0
        %323 = vmatpush1.msra.mxu0 0.0
        %324 = vmatprep.subr.mxu0 0.0
        %325 = vmatpush1.msra.mxu0 0.0
        %326 = vmatprep.subr.mxu0 0.0
        %327 = vmatpush1.msra.mxu0 0.0
        %328 = vmatprep.subr.mxu0 0.0
        %329 = vmatpush1.msra.mxu0 0.0
        %330 = vmatprep.subr.mxu0 0.0
        %331 = vmatpush1.msra.mxu0 0.0
        %332 = vmatprep.subr.mxu0 0.0
        %333 = vmatpush1.msra.mxu0 0.0
        %334 = vmatprep.subr.mxu0 0.0
        %335 = vmatpush1.msra.mxu0 0.0
        %336 = vmatprep.subr.mxu0 0.0
        %337 = vmatpush1.msra.mxu0 0.0
        %338 = vmatprep.subr.mxu0 0.0
        %339 = vmatpush1.msra.mxu0 0.0
        %340 = vmatprep.subr.mxu0 0.0
        %341 = vmatpush1.msra.mxu0 0.0
        %342 = vmatprep.subr.mxu0 0.0
        %343 = vmatpush1.msra.mxu0 0.0
        %344 = vmatprep.subr.mxu0 0.0
        %345 = vmatpush1.msra.mxu0 0.0
        %346 = vmatprep.subr.mxu0 0.0
        %347 = vmatpush1.msra.mxu0 0.0
        %348 = vmatprep.subr.mxu0 0.0
        %349 = vmatpush1.msra.mxu0 0.0
        %350 = vmatprep.subr.mxu0 0.0
        %351 = vmatpush1.msra.mxu0 0.0
        %352 = vmatprep.subr.mxu0 0.0
        %353 = vmatpush1.msra.mxu0 0.0
        %354 = vmatprep.subr.mxu0 0.0
        %355 = vmatpush1.msra.mxu0 0.0
        %356 = vmatprep.subr.mxu0 0.0
        %357 = vmatpush1.msra.mxu0 0.0
        %358 = vmatprep.subr.mxu0 0.0
        %359 = vmatpush1.msra.mxu0 0.0
        %360 = vmatprep.subr.mxu0 0.0
        %361 = vmatpush1.msra.mxu0 0.0
        %362 = vmatprep.subr.mxu0 0.0
        %363 = vmatpush1.msra.mxu0 0.0
        %364 = vmatprep.subr.mxu0 0.0
        %365 = vmatpush1.msra.mxu0 0.0
        %366 = vmatprep.subr.mxu0 0.0
        %367 = vmatpush1.msra.mxu0 0.0
        %368 = vmatprep.subr.mxu0 0.0
        %369 = vmatpush1.msra.mxu0 0.0
        %370 = vmatprep.subr.mxu0 0.0
        %371 = vmatpush1.msra.mxu0 0.0
        %372 = vmatprep.subr.mxu0 0.0
        %373 = vmatpush1.msra.mxu0 0.0
        %374 = vmatprep.subr.mxu0 0.0
        %375 = vmatpush1.msra.mxu0 0.0
        %376 = vmatprep.subr.mxu0 0.0
        %377 = vmatpush1.msra.mxu0 0.0
        %378 = vmatprep.mubr.f32.mxu0 0.0
        %379 = vmatmul.mubr.f32.gmra.mrb[0].mxu0 %v312
        %v380 = vpop.f32.mrb[0].mxu0
        %v381 = vadd.f32 %v308, %v380
        %v382 = vpop.f32.mrb[0].mxu0
        %383 = vdwg.mxu0
        %v384 = vmul.f32 %v381, 0.5
        %v385 = vmul.f32 %v381, 0.70710677
        %v386 = verf.f32.pop %v385
        %v387 = vadd.f32 %v386, 1.0
        %v388 = vmul.f32 %v384, %v387
        %v389 = vld [vmem:[%s267] sm:$0xff]
        %v390 = vld [vmem:[%s283] sm:$0xff]
        %v391 = vld [vmem:[%s283 + $0x8] sm:$0xff]
        %v392 = vld [vmem:[%s283 + $0x10] sm:$0xff]
        %v393 = vld [vmem:[%s283 + $0x18] sm:$0xff]
        %v394 = vld [vmem:[%s283 + $0x20] sm:$0xff]
        %v395 = vld [vmem:[%s283 + $0x28] sm:$0xff]
        %v396 = vld [vmem:[%s283 + $0x30] sm:$0xff]
        %v397 = vld [vmem:[%s283 + $0x38] sm:$0xff]
        %v398 = vld [vmem:[%s283 + $0x40] sm:$0xff]
        %v399 = vld [vmem:[%s283 + $0x48] sm:$0xff]
        %v400 = vld [vmem:[%s283 + $0x50] sm:$0xff]
        %v401 = vld [vmem:[%s283 + $0x58] sm:$0xff]
        %v402 = vld [vmem:[%s283 + $0x60] sm:$0xff]
        %v403 = vld [vmem:[%s283 + $0x68] sm:$0xff]
        %v404 = vld [vmem:[%s283 + $0x70] sm:$0xff]
        %v405 = vld [vmem:[%s283 + $0x78] sm:$0xff]
        %406 = vmatprep.subr.mxu0 0.0
        %407 = vmatpush1.msra.mxu0 %v390
        %408 = vmatprep.subr.mxu0 0.0
        %409 = vmatpush1.msra.mxu0 %v391
        %410 = vmatprep.subr.mxu0 0.0
        %411 = vmatpush1.msra.mxu0 %v392
        %412 = vmatprep.subr.mxu0 0.0
        %413 = vmatpush1.msra.mxu0 %v393
        %414 = vmatprep.subr.mxu0 0.0
        %415 = vmatpush1.msra.mxu0 %v394
        %416 = vmatprep.subr.mxu0 0.0
        %417 = vmatpush1.msra.mxu0 %v395
        %418 = vmatprep.subr.mxu0 0.0
        %419 = vmatpush1.msra.mxu0 %v396
        %420 = vmatprep.subr.mxu0 0.0
        %421 = vmatpush1.msra.mxu0 %v397
        %422 = vmatprep.subr.mxu0 0.0
        %423 = vmatpush1.msra.mxu0 %v398
        %424 = vmatprep.subr.mxu0 0.0
        %425 = vmatpush1.msra.mxu0 %v399
        %426 = vmatprep.subr.mxu0 0.0
        %427 = vmatpush1.msra.mxu0 %v400
        %428 = vmatprep.subr.mxu0 0.0
        %429 = vmatpush1.msra.mxu0 %v401
        %430 = vmatprep.subr.mxu0 0.0
        %431 = vmatpush1.msra.mxu0 %v402
        %432 = vmatprep.subr.mxu0 0.0
        %433 = vmatpush1.msra.mxu0 %v403
        %434 = vmatprep.subr.mxu0 0.0
        %435 = vmatpush1.msra.mxu0 %v404
        %436 = vmatprep.subr.mxu0 0.0
        %437 = vmatpush1.msra.mxu0 %v405
        %438 = vmatprep.subr.mxu0 0.0
        %439 = vmatpush1.msra.mxu0 0.0
        %440 = vmatprep.subr.mxu0 0.0
        %441 = vmatpush1.msra.mxu0 0.0
        %442 = vmatprep.subr.mxu0 0.0
        %443 = vmatpush1.msra.mxu0 0.0
        %444 = vmatprep.subr.mxu0 0.0
        %445 = vmatpush1.msra.mxu0 0.0
        %446 = vmatprep.subr.mxu0 0.0
        %447 = vmatpush1.msra.mxu0 0.0
        %448 = vmatprep.subr.mxu0 0.0
        %449 = vmatpush1.msra.mxu0 0.0
        %450 = vmatprep.subr.mxu0 0.0
        %451 = vmatpush1.msra.mxu0 0.0
        %452 = vmatprep.subr.mxu0 0.0
        %453 = vmatpush1.msra.mxu0 0.0
        %454 = vmatprep.subr.mxu0 0.0
        %455 = vmatpush1.msra.mxu0 0.0
        %456 = vmatprep.subr.mxu0 0.0
        %457 = vmatpush1.msra.mxu0 0.0
        %458 = vmatprep.subr.mxu0 0.0
        %459 = vmatpush1.msra.mxu0 0.0
        %460 = vmatprep.subr.mxu0 0.0
        %461 = vmatpush1.msra.mxu0 0.0
        %462 = vmatprep.subr.mxu0 0.0
        %463 = vmatpush1.msra.mxu0 0.0
        %464 = vmatprep.subr.mxu0 0.0
        %465 = vmatpush1.msra.mxu0 0.0
        %466 = vmatprep.subr.mxu0 0.0
        %467 = vmatpush1.msra.mxu0 0.0
        %468 = vmatprep.subr.mxu0 0.0
        %469 = vmatpush1.msra.mxu0 0.0
        %470 = vmatprep.mubr.f32.mxu0 0.0
        %471 = vmatmul.mubr.f32.gmra.mrb[0].mxu0 %v388
        %v472 = vpop.f32.mrb[0].mxu0
        %v473 = vadd.f32 0.0, %v472
        %v474 = vpop.f32.mrb[0].mxu0
        %475 = vdwg.mxu0
        %v476 = vadd.f32 %v389, %v473
        %477 = vst.msk [vmem:[%s267] sm:$0xff] %vm310, %v476
        %s478 = sand.u32 %s164, 1
        %s479 = scalar_lea.sflag [#allocation3], %s478
        %s480 = sand.u32 %s164, 1
        %s481 = smul.addr %s480, 8
        %s482 = scalar_lea.vmem [#allocation2], %s481
        // Predicated region
        $region45: #{_mlp_pallas.1} parent=39 // pred_check
          %p483 = pneg %p174
        $region46: #{_mlp_pallas.1} parent=39 // pred_check_branch
          %485 = sbr.rel (%p483) target = $region48
        $region47: #{_mlp_pallas.1} parent=39 // pred_region
          %s487 = ssub.s32 128, 128
          %488 = vsyncadd %s479, %s487
          %s489 = smul.addr %s23, 128
          %s490 = scalar_lea.hbm %s5, %s489
          %s492 = sshll.u32 %s482, 4
          %s493 = int_to_ptr.vmem [resolvable:$true] %s492
          %495 = dma.vmem_to_hbm [thread:$0]  %s493, 128, %s490, %s479
        $region48: #{_mlp_pallas.1} parent=39 // pred_fallthru
          _
      $region40: #{_mlp_pallas.1} parent=5 // pred_fallthru
        _
      %p496 = scmp.le.s32.totalorder 2, %s14
      // Predicated region
      $region49: #{_mlp_pallas.1} parent=5 // pred_check
        %p497 = pneg %p496
      $region50: #{_mlp_pallas.1} parent=5 // pred_check_branch
        %499 = sbr.rel (%p497) target = $region52
      $region51: #{_mlp_pallas.1} parent=5 // pred_region
        %s500 = ssub.s32 %s14, 2
        // Predicated region
        $region53: #{_mlp_pallas.1} parent=51 // pred_check
          %p501 = pneg %p180
        $region54: #{_mlp_pallas.1} parent=51 // pred_check_branch
          %503 = sbr.rel (%p501) target = $region56
        $region55: #{_mlp_pallas.1} parent=51 // pred_region
          %s504 = sand.u32 %s165, 1
          %s505 = scalar_lea.sflag [#allocation3], %s504
          %s506 = sand.u32 %s165, 1
          %s507 = smul.addr %s506, 8
          %s508 = scalar_lea.vmem [#allocation2], %s507
          %509 = dma.done %s505, 128
        $region56: #{_mlp_pallas.1} parent=51 // pred_fallthru
          _
      $region52: #{_mlp_pallas.1} parent=5 // pred_fallthru
        _
    $region6: #{_mlp_pallas.1} parent=1 // loop_footer
      %s18 = sadd.s32 1, %s14
    $region7: #{_mlp_pallas.1} parent=1 // loop_footer_branch
      %13 = sbr.rel target = $region3
    $region8: #{_mlp_pallas.1} parent=1 // loop_exit
      _
    %510 = vsyncpa [#allocation3], 1
    %s511 = scalar_lea.sflag [#allocation3], 1
    %512 = vsyncpa %s511, 1

</llo_original>
